<compile_context>
chip_gen: v5e
topology: v5e:2x2
jax: 0.10.0
libtpu: 0.0.40
codegen_flags: <defaults>
</compile_context>

<pallas_src>
import jax
import jax.numpy as jnp
from jax.experimental import pallas as pl
from jax.experimental.pallas import tpu as pltpu


def _round_up(n: int, m: int) -> int:
    return ((n + m - 1) // m) * m


def _pad2(a, rows, cols, dtype):
    return jnp.pad(a, ((0, rows - a.shape[0]), (0, cols - a.shape[1]))).astype(dtype)


def _vmem_capacity_bytes() -> int:
    """Physical VMEM per TensorCore (v5e/v6e: 128 MiB, v7x: 64 MiB)."""
    try:
        cap = getattr(pltpu.get_tpu_info(), "vmem_capacity_bytes", None)
        if cap:
            return int(cap)
    except Exception:
        pass
    return 64 * 2**20  # conservative fallback (v7x per-core VMEM)


def _pick_tm(B, fits):
    """Batch tile: multiples of 16 (bf16 sublane packing); prefer the largest
    tile that fits VMEM with acceptable batch-padding waste."""
    best_fitting = None
    for t in (512, 256, 128, 64, 32, 16):
        if not fits(t):
            continue
        if best_fitting is None:
            best_fitting = t
        waste = _round_up(B, t) - B
        if waste <= max(B // 8, 16):
            return t
    return best_fitting if best_fitting is not None else 16


def pack_params(w1a, w1b, b1, w2, b2, *, compute_dtype=jnp.bfloat16):
    """One-time weight packing (transpose / zero-pad / cast).

    Call once and reuse: hoisting this out of the forward path avoids
    re-reading and re-writing the weight matrices in HBM on every call.
    Weights are given PyTorch-style (out_features, in_features).
    """
    d_hid, d_in = w1a.shape
    d_out = w2.shape[0]
    H = _round_up(d_hid, 128)   # lane-dense; 256 would further suit v6e/v7x MXU
    N = _round_up(d_out, 128)
    return dict(
        w1a=_pad2(jnp.transpose(w1a), d_in, H, compute_dtype),   # (d_in, H)
        w1b=_pad2(jnp.transpose(w1b), d_in, H, compute_dtype),   # (d_in, H)
        b1=jnp.pad(b1, (0, H - d_hid)).reshape(1, H).astype(jnp.float32),
        w2=_pad2(jnp.transpose(w2), H, N, compute_dtype),        # (H, N)
        b2=jnp.pad(b2, (0, N - d_out)).reshape(1, N).astype(jnp.float32),
        d_in=d_in, d_hid=d_hid, d_out=d_out,
    )


def _seq_kernel(x1_ref, x2_ref, w1a_ref, w1b_ref, b1_ref, w2_ref, b2_ref,
                o_ref, h_ref):
    # module 0 + module 1: compute the hidden activation once per batch tile
    # (j == 0) and keep it in VMEM scratch for every output-column tile.
    @pl.when(pl.program_id(1) == 0)
    def _():
        cdt = w1a_ref.dtype
        h = jnp.dot(x1_ref[...].astype(cdt), w1a_ref[...],
                    preferred_element_type=jnp.float32)
        h = h + jnp.dot(x2_ref[...].astype(cdt), w1b_ref[...],
                        preferred_element_type=jnp.float32)
        h = jnp.maximum(h + b1_ref[...], 0.0)        # bias + ReLU in f32
        h_ref[...] = h.astype(h_ref.dtype)

    # module 2: Linear on the current output-column tile.
    out = jnp.dot(h_ref[...], w2_ref[...], preferred_element_type=jnp.float32)
    o_ref[...] = (out + b2_ref[...]).astype(o_ref.dtype)


def multi_input_sequential(x1, x2, params, *, out_dtype=None):
    """Fused forward for MultiInputSequential(TwoInputLinear, ReLU, Linear)."""
    B, d_in = x1.shape
    assert x2.shape == (B, d_in)
    w1a, w1b, b1, w2, b2 = (params["w1a"], params["w1b"], params["b1"],
                            params["w2"], params["b2"])
    d_out = params["d_out"]
    H = w1a.shape[1]
    N = w2.shape[1]
    compute_dtype = w1a.dtype
    out_dtype = x1.dtype if out_dtype is None else out_dtype   # bf16 mode available

    xbytes = jnp.dtype(x1.dtype).itemsize
    cbytes = jnp.dtype(compute_dtype).itemsize
    obytes = jnp.dtype(out_dtype).itemsize

    # ---- VMEM budget from the actual device (v7x: 64 MiB/TC) ----
    budget = int(0.85 * _vmem_capacity_bytes())

    # ---- output-column tiling: stream W2 if it cannot comfortably stay resident
    # TODO(synk): add an H-reduction grid axis (accumulator + pl.when) for the
    # case where even a single (H, tn) W2 tile does not fit VMEM.
    if H * N * cbytes <= budget // 4:
        tn = N
    else:
        tn = 512 if N % 512 == 0 else (256 if N % 256 == 0 else 128)
    grid_n = N // tn
    w2_bufs = 1 if grid_n == 1 else 2

    # ---- honest VMEM accounting ----
    fixed = (2 * d_in * H * cbytes + H * 4                 # W1a, W1b, b1 (1 buffer)
             + w2_bufs * (H * tn * cbytes + tn * 4))       # W2, b2 tiles

    def _tile_bytes(tm):
        return (2 * 2 * tm * d_in * xbytes     # x1, x2 tiles, double-buffered
                + 2 * tm * tn * obytes         # output tile, double-buffered
                + tm * H * cbytes)             # hidden-activation VMEM scratch

    def _fits(tm):
        return fixed + _tile_bytes(tm) <= budget

    tm = _pick_tm(B, _fits)
    Bp = _round_up(B, tm)
    grid_m = Bp // tm

    x1p, x2p = x1, x2
    if Bp != B:
        x1p = jnp.pad(x1, ((0, Bp - B), (0, 0)))
        x2p = jnp.pad(x2, ((0, Bp - B), (0, 0)))

    vmem_needed = fixed + _tile_bytes(tm)
    # 2x margin also covers the fallback path with double-buffered weights;
    # always clamped to physical VMEM.
    vmem_limit = int(min(budget, max(2 * vmem_needed, 32 * 2**20)))

    # Advisory cost estimate for the padded arrays actually moved / computed.
    flops = 4 * Bp * d_in * H + 2 * Bp * H * N
    bytes_accessed = int(
        (x1p.size + x2p.size) * xbytes
        + 2 * d_in * H * cbytes + H * 4
        + (grid_m if grid_n > 1 else 1) * (H * N * cbytes + N * 4)
        + Bp * N * obytes)

    def _build(single_buffer_weights):
        resident = pl.Buffered(1) if single_buffer_weights else None
        w2_mode = pl.Buffered(1) if (single_buffer_weights and grid_n == 1) else None
        return pl.pallas_call(
            _seq_kernel,
            out_shape=jax.ShapeDtypeStruct((Bp, N), out_dtype),
            grid=(grid_m, grid_n),
            in_specs=[
                pl.BlockSpec((tm, d_in), lambda i, j: (i, 0)),    # x1 tile
                pl.BlockSpec((tm, d_in), lambda i, j: (i, 0)),    # x2 tile
                pl.BlockSpec((d_in, H), lambda i, j: (0, 0),
                             pipeline_mode=resident),             # W1a.T resident
                pl.BlockSpec((d_in, H), lambda i, j: (0, 0),
                             pipeline_mode=resident),             # W1b.T resident
                pl.BlockSpec((1, H), lambda i, j: (0, 0),
                             pipeline_mode=resident),             # b1 resident
                pl.BlockSpec((H, tn), lambda i, j: (0, j),
                             pipeline_mode=w2_mode),              # W2.T column tile
                pl.BlockSpec((1, tn), lambda i, j: (0, j),
                             pipeline_mode=w2_mode),              # b2 column tile
            ],
            out_specs=pl.BlockSpec((tm, tn), lambda i, j: (i, j)),
            scratch_shapes=[pltpu.VMEM((tm, H), compute_dtype)],  # hidden act
            compiler_params=pltpu.CompilerParams(
                dimension_semantics=("parallel", "arbitrary"),
                vmem_limit_bytes=vmem_limit),
            cost_estimate=pl.CostEstimate(flops=flops, transcendentals=0,
                                          bytes_accessed=bytes_accessed),
        )

    try:
        out_padded = _build(True)(x1p, x2p, w1a, w1b, b1, w2, b2)
    except Exception:
        # TODO(synk): drop fallback once pl.Buffered(1) (single-buffered
        # resident weights) is guaranteed by the installed jax version.
        out_padded = _build(False)(x1p, x2p, w1a, w1b, b1, w2, b2)

    return out_padded[:B, :d_out]


def _reference(x1, x2, w1a, w1b, b1, w2, b2):
    h = x1 @ w1a.T + x2 @ w1b.T + b1
    h = jnp.maximum(h, 0.0)
    return h @ w2.T + b2


if __name__ == "__main__":
    key = jax.random.PRNGKey(0)
    B, D_IN, D_HID, D_OUT = 8, 32, 32, 32

    ks = jax.random.split(key, 7)
    x1 = jax.random.normal(ks[0], (B, D_IN), jnp.float32)
    x2 = jax.random.normal(ks[1], (B, D_IN), jnp.float32)
    # PyTorch-style weight shapes: (out_features, in_features)
    w1a = jax.random.normal(ks[2], (D_HID, D_IN), jnp.float32) * 0.1
    w1b = jax.random.normal(ks[3], (D_HID, D_IN), jnp.float32) * 0.1
    b1 = jax.random.normal(ks[4], (D_HID,), jnp.float32) * 0.1
    w2 = jax.random.normal(ks[5], (D_OUT, D_HID), jnp.float32) * 0.1
    b2 = jax.random.normal(ks[6], (D_OUT,), jnp.float32) * 0.1

    params = pack_params(w1a, w1b, b1, w2, b2)      # one-time weight packing
    out = multi_input_sequential(x1, x2, params)
    out = jax.block_until_ready(out)

    ref = _reference(x1, x2, w1a, w1b, b1, w2, b2)
    assert out.shape == (B, D_OUT)
    # bf16 matmul operands with f32 accumulation -> relaxed tolerance vs f32 ref
    assert jnp.allclose(out, ref, atol=2e-2, rtol=2e-2), (
        float(jnp.max(jnp.abs(out - ref))))

    print("KERNEL_OK")
</pallas_src>

<mosaic_0001>
module attributes {stable_mosaic.version = 11 : i64} {
  func.func @_seq_kernel(%arg0: i32, %arg1: i32, %arg2: memref<16x32xf32, #tpu.memory_space<vmem>>, %arg3: memref<16x32xf32, #tpu.memory_space<vmem>>, %arg4: memref<32x128xbf16, #tpu.memory_space<vmem>>, %arg5: memref<32x128xbf16, #tpu.memory_space<vmem>>, %arg6: memref<1x128xf32, #tpu.memory_space<vmem>>, %arg7: memref<128x128xbf16, #tpu.memory_space<vmem>>, %arg8: memref<1x128xf32, #tpu.memory_space<vmem>>, %arg9: memref<16x128xf32, #tpu.memory_space<vmem>>, %arg10: memref<16x128xbf16, #tpu.memory_space<vmem>>) attributes {dimension_semantics = [#tpu.dimension_semantics<parallel>, #tpu.dimension_semantics<arbitrary>], iteration_bounds = array<i64: 1, 1>, scalar_prefetch = 0 : i64, scratch_operands = 1 : i64, tpu.core_type = #tpu.core_type<tc>, window_params = [{transform_indices = @transform_0, window_bounds = array<i64: 16, 32>}, {transform_indices = @transform_1, window_bounds = array<i64: 16, 32>}, {pipeline_mode = #tpu.pipeline_mode<synchronous>, transform_indices = @transform_2, window_bounds = array<i64: 32, 128>}, {pipeline_mode = #tpu.pipeline_mode<synchronous>, transform_indices = @transform_3, window_bounds = array<i64: 32, 128>}, {pipeline_mode = #tpu.pipeline_mode<synchronous>, transform_indices = @transform_4, window_bounds = array<i64: 1, 128>}, {pipeline_mode = #tpu.pipeline_mode<synchronous>, transform_indices = @transform_5, window_bounds = array<i64: 128, 128>}, {pipeline_mode = #tpu.pipeline_mode<synchronous>, transform_indices = @transform_6, window_bounds = array<i64: 1, 128>}, {transform_indices = @transform_7, window_bounds = array<i64: 16, 128>}]} {
    %c0_i32 = arith.constant 0 : i32
    %0 = arith.cmpi eq, %arg1, %c0_i32 : i32
    %1 = arith.extui %0 : i1 to i32
    %c0_i32_0 = arith.constant 0 : i32
    %2 = arith.cmpi ne, %1, %c0_i32_0 : i32
    scf.if %2 {
      %c0_8 = arith.constant 0 : index
      %c0_9 = arith.constant 0 : index
      %10 = vector.load %arg2[%c0_8, %c0_9] : memref<16x32xf32, #tpu.memory_space<vmem>>, vector<16x32xf32>
      %11 = arith.truncf %10 : vector<16x32xf32> to vector<16x32xbf16>
      %c0_10 = arith.constant 0 : index
      %c0_11 = arith.constant 0 : index
      %12 = vector.load %arg4[%c0_10, %c0_11] : memref<32x128xbf16, #tpu.memory_space<vmem>>, vector<32x128xbf16>
      %cst_12 = arith.constant dense<0.000000e+00> : vector<16x128xf32>
      %13 = tpu.matmul %11, %12, %cst_12 {dimension_numbers = #tpu.dot_dimension_numbers<[1], [0], [0], [1], [0, 0, 1, 1], [], []>} : vector<16x32xbf16>, vector<32x128xbf16>, vector<16x128xf32> -> vector<16x128xf32>
      %c0_13 = arith.constant 0 : index
      %c0_14 = arith.constant 0 : index
      %14 = vector.load %arg3[%c0_13, %c0_14] : memref<16x32xf32, #tpu.memory_space<vmem>>, vector<16x32xf32>
      %15 = arith.truncf %14 : vector<16x32xf32> to vector<16x32xbf16>
      %c0_15 = arith.constant 0 : index
      %c0_16 = arith.constant 0 : index
      %16 = vector.load %arg5[%c0_15, %c0_16] : memref<32x128xbf16, #tpu.memory_space<vmem>>, vector<32x128xbf16>
      %cst_17 = arith.constant dense<0.000000e+00> : vector<16x128xf32>
      %17 = tpu.matmul %15, %16, %cst_17 {dimension_numbers = #tpu.dot_dimension_numbers<[1], [0], [0], [1], [0, 0, 1, 1], [], []>} : vector<16x32xbf16>, vector<32x128xbf16>, vector<16x128xf32> -> vector<16x128xf32>
      %18 = arith.addf %13, %17 : vector<16x128xf32>
      %c0_18 = arith.constant 0 : index
      %c0_19 = arith.constant 0 : index
      %19 = vector.load %arg6[%c0_18, %c0_19] : memref<1x128xf32, #tpu.memory_space<vmem>>, vector<1x128xf32>
      %20 = vector.broadcast %19 : vector<1x128xf32> to vector<16x128xf32>
      %21 = arith.addf %18, %20 : vector<16x128xf32>
      %cst_20 = arith.constant 0.000000e+00 : f32
      %22 = vector.broadcast %cst_20 : f32 to vector<16x128xf32>
      %23 = arith.maximumf %21, %22 : vector<16x128xf32>
      %24 = arith.truncf %23 : vector<16x128xf32> to vector<16x128xbf16>
      %c0_21 = arith.constant 0 : index
      %c0_22 = arith.constant 0 : index
      %25 = vector.load %arg10[%c0_21, %c0_22] : memref<16x128xbf16, #tpu.memory_space<vmem>>, vector<16x128xbf16>
      tpu.vector_store %arg10[%c0_21, %c0_22], %24 {strides = array<i32>} : memref<16x128xbf16, #tpu.memory_space<vmem>>, vector<16x128xbf16>,
    } else {
    }
    %c0 = arith.constant 0 : index
    %c0_1 = arith.constant 0 : index
    %3 = vector.load %arg10[%c0, %c0_1] : memref<16x128xbf16, #tpu.memory_space<vmem>>, vector<16x128xbf16>
    %c0_2 = arith.constant 0 : index
    %c0_3 = arith.constant 0 : index
    %4 = vector.load %arg7[%c0_2, %c0_3] : memref<128x128xbf16, #tpu.memory_space<vmem>>, vector<128x128xbf16>
    %cst = arith.constant dense<0.000000e+00> : vector<16x128xf32>
    %5 = tpu.matmul %3, %4, %cst {dimension_numbers = #tpu.dot_dimension_numbers<[1], [0], [0], [1], [0, 0, 1, 1], [], []>} : vector<16x128xbf16>, vector<128x128xbf16>, vector<16x128xf32> -> vector<16x128xf32>
    %c0_4 = arith.constant 0 : index
    %c0_5 = arith.constant 0 : index
    %6 = vector.load %arg8[%c0_4, %c0_5] : memref<1x128xf32, #tpu.memory_space<vmem>>, vector<1x128xf32>
    %7 = vector.broadcast %6 : vector<1x128xf32> to vector<16x128xf32>
    %8 = arith.addf %5, %7 : vector<16x128xf32>
    %c0_6 = arith.constant 0 : index
    %c0_7 = arith.constant 0 : index
    %9 = vector.load %arg9[%c0_6, %c0_7] : memref<16x128xf32, #tpu.memory_space<vmem>>, vector<16x128xf32>
    tpu.vector_store %arg9[%c0_6, %c0_7], %8 {strides = array<i32>} : memref<16x128xf32, #tpu.memory_space<vmem>>, vector<16x128xf32>,
    return
  }
  func.func @transform_0(%arg0: i32, %arg1: i32) -> (i32, i32) {
    %c0_i32 = arith.constant 0 : i32
    %c0_i32_0 = arith.constant 0 : i32
    return %arg0, %c0_i32 : i32, i32
  }
  func.func @transform_1(%arg0: i32, %arg1: i32) -> (i32, i32) {
    %c0_i32 = arith.constant 0 : i32
    %c0_i32_0 = arith.constant 0 : i32
    return %arg0, %c0_i32 : i32, i32
  }
  func.func @transform_2(%arg0: i32, %arg1: i32) -> (i32, i32) {
    %c0_i32 = arith.constant 0 : i32
    %c0_i32_0 = arith.constant 0 : i32
    %c0_i32_1 = arith.constant 0 : i32
    return %c0_i32, %c0_i32_0 : i32, i32
  }
  func.func @transform_3(%arg0: i32, %arg1: i32) -> (i32, i32) {
    %c0_i32 = arith.constant 0 : i32
    %c0_i32_0 = arith.constant 0 : i32
    %c0_i32_1 = arith.constant 0 : i32
    return %c0_i32, %c0_i32_0 : i32, i32
  }
  func.func @transform_4(%arg0: i32, %arg1: i32) -> (i32, i32) {
    %c0_i32 = arith.constant 0 : i32
    %c0_i32_0 = arith.constant 0 : i32
    %c0_i32_1 = arith.constant 0 : i32
    return %c0_i32, %c0_i32_0 : i32, i32
  }
  func.func @transform_5(%arg0: i32, %arg1: i32) -> (i32, i32) {
    %c0_i32 = arith.constant 0 : i32
    %c0_i32_0 = arith.constant 0 : i32
    return %c0_i32, %arg1 : i32, i32
  }
  func.func @transform_6(%arg0: i32, %arg1: i32) -> (i32, i32) {
    %c0_i32 = arith.constant 0 : i32
    %c0_i32_0 = arith.constant 0 : i32
    return %c0_i32, %arg1 : i32, i32
  }
  func.func @transform_7(%arg0: i32, %arg1: i32) -> (i32, i32) {
    %c0_i32 = arith.constant 0 : i32
    return %arg0, %arg1 : i32, i32
  }
}

module attributes {stable_mosaic.version = 11 : i64} {
  func.func @_seq_kernel(%arg0: i32, %arg1: i32, %arg2: memref<16x32xf32, #tpu.memory_space<vmem>>, %arg3: memref<16x32xf32, #tpu.memory_space<vmem>>, %arg4: memref<32x128xbf16, #tpu.memory_space<vmem>>, %arg5: memref<32x128xbf16, #tpu.memory_space<vmem>>, %arg6: memref<1x128xf32, #tpu.memory_space<vmem>>, %arg7: memref<128x128xbf16, #tpu.memory_space<vmem>>, %arg8: memref<1x128xf32, #tpu.memory_space<vmem>>, %arg9: memref<16x128xf32, #tpu.memory_space<vmem>>, %arg10: memref<16x128xbf16, #tpu.memory_space<vmem>>) attributes {dimension_semantics = [#tpu.dimension_semantics<parallel>, #tpu.dimension_semantics<arbitrary>], iteration_bounds = array<i64: 1, 1>, scalar_prefetch = 0 : i64, scratch_operands = 1 : i64, tpu.core_type = #tpu.core_type<tc>, window_params = [{transform_indices = @transform_0, window_bounds = array<i64: 16, 32>}, {transform_indices = @transform_1, window_bounds = array<i64: 16, 32>}, {pipeline_mode = #tpu.pipeline_mode<synchronous>, transform_indices = @transform_2, window_bounds = array<i64: 32, 128>}, {pipeline_mode = #tpu.pipeline_mode<synchronous>, transform_indices = @transform_3, window_bounds = array<i64: 32, 128>}, {pipeline_mode = #tpu.pipeline_mode<synchronous>, transform_indices = @transform_4, window_bounds = array<i64: 1, 128>}, {transform_indices = @transform_5, window_bounds = array<i64: 128, 128>}, {transform_indices = @transform_6, window_bounds = array<i64: 1, 128>}, {transform_indices = @transform_7, window_bounds = array<i64: 16, 128>}]} {
    %c0_i32 = arith.constant 0 : i32
    %0 = arith.cmpi eq, %arg1, %c0_i32 : i32
    %1 = arith.extui %0 : i1 to i32
    %c0_i32_0 = arith.constant 0 : i32
    %2 = arith.cmpi ne, %1, %c0_i32_0 : i32
    scf.if %2 {
      %c0_8 = arith.constant 0 : index
      %c0_9 = arith.constant 0 : index
      %10 = vector.load %arg2[%c0_8, %c0_9] : memref<16x32xf32, #tpu.memory_space<vmem>>, vector<16x32xf32>
      %11 = arith.truncf %10 : vector<16x32xf32> to vector<16x32xbf16>
      %c0_10 = arith.constant 0 : index
      %c0_11 = arith.constant 0 : index
      %12 = vector.load %arg4[%c0_10, %c0_11] : memref<32x128xbf16, #tpu.memory_space<vmem>>, vector<32x128xbf16>
      %cst_12 = arith.constant dense<0.000000e+00> : vector<16x128xf32>
      %13 = tpu.matmul %11, %12, %cst_12 {dimension_numbers = #tpu.dot_dimension_numbers<[1], [0], [0], [1], [0, 0, 1, 1], [], []>} : vector<16x32xbf16>, vector<32x128xbf16>, vector<16x128xf32> -> vector<16x128xf32>
      %c0_13 = arith.constant 0 : index
      %c0_14 = arith.constant 0 : index
      %14 = vector.load %arg3[%c0_13, %c0_14] : memref<16x32xf32, #tpu.memory_space<vmem>>, vector<16x32xf32>
      %15 = arith.truncf %14 : vector<16x32xf32> to vector<16x32xbf16>
      %c0_15 = arith.constant 0 : index
      %c0_16 = arith.constant 0 : index
      %16 = vector.load %arg5[%c0_15, %c0_16] : memref<32x128xbf16, #tpu.memory_space<vmem>>, vector<32x128xbf16>
      %cst_17 = arith.constant dense<0.000000e+00> : vector<16x128xf32>
      %17 = tpu.matmul %15, %16, %cst_17 {dimension_numbers = #tpu.dot_dimension_numbers<[1], [0], [0], [1], [0, 0, 1, 1], [], []>} : vector<16x32xbf16>, vector<32x128xbf16>, vector<16x128xf32> -> vector<16x128xf32>
      %18 = arith.addf %13, %17 : vector<16x128xf32>
      %c0_18 = arith.constant 0 : index
      %c0_19 = arith.constant 0 : index
      %19 = vector.load %arg6[%c0_18, %c0_19] : memref<1x128xf32, #tpu.memory_space<vmem>>, vector<1x128xf32>
      %20 = vector.broadcast %19 : vector<1x128xf32> to vector<16x128xf32>
      %21 = arith.addf %18, %20 : vector<16x128xf32>
      %cst_20 = arith.constant 0.000000e+00 : f32
      %22 = vector.broadcast %cst_20 : f32 to vector<16x128xf32>
      %23 = arith.maximumf %21, %22 : vector<16x128xf32>
      %24 = arith.truncf %23 : vector<16x128xf32> to vector<16x128xbf16>
      %c0_21 = arith.constant 0 : index
      %c0_22 = arith.constant 0 : index
      %25 = vector.load %arg10[%c0_21, %c0_22] : memref<16x128xbf16, #tpu.memory_space<vmem>>, vector<16x128xbf16>
      tpu.vector_store %arg10[%c0_21, %c0_22], %24 {strides = array<i32>} : memref<16x128xbf16, #tpu.memory_space<vmem>>, vector<16x128xbf16>,
    } else {
    }
    %c0 = arith.constant 0 : index
    %c0_1 = arith.constant 0 : index
    %3 = vector.load %arg10[%c0, %c0_1] : memref<16x128xbf16, #tpu.memory_space<vmem>>, vector<16x128xbf16>
    %c0_2 = arith.constant 0 : index
    %c0_3 = arith.constant 0 : index
    %4 = vector.load %arg7[%c0_2, %c0_3] : memref<128x128xbf16, #tpu.memory_space<vmem>>, vector<128x128xbf16>
    %cst = arith.constant dense<0.000000e+00> : vector<16x128xf32>
    %5 = tpu.matmul %3, %4, %cst {dimension_numbers = #tpu.dot_dimension_numbers<[1], [0], [0], [1], [0, 0, 1, 1], [], []>} : vector<16x128xbf16>, vector<128x128xbf16>, vector<16x128xf32> -> vector<16x128xf32>
    %c0_4 = arith.constant 0 : index
    %c0_5 = arith.constant 0 : index
    %6 = vector.load %arg8[%c0_4, %c0_5] : memref<1x128xf32, #tpu.memory_space<vmem>>, vector<1x128xf32>
    %7 = vector.broadcast %6 : vector<1x128xf32> to vector<16x128xf32>
    %8 = arith.addf %5, %7 : vector<16x128xf32>
    %c0_6 = arith.constant 0 : index
    %c0_7 = arith.constant 0 : index
    %9 = vector.load %arg9[%c0_6, %c0_7] : memref<16x128xf32, #tpu.memory_space<vmem>>, vector<16x128xf32>
    tpu.vector_store %arg9[%c0_6, %c0_7], %8 {strides = array<i32>} : memref<16x128xf32, #tpu.memory_space<vmem>>, vector<16x128xf32>,
    return
  }
  func.func @transform_0(%arg0: i32, %arg1: i32) -> (i32, i32) {
    %c0_i32 = arith.constant 0 : i32
    %c0_i32_0 = arith.constant 0 : i32
    return %arg0, %c0_i32 : i32, i32
  }
  func.func @transform_1(%arg0: i32, %arg1: i32) -> (i32, i32) {
    %c0_i32 = arith.constant 0 : i32
    %c0_i32_0 = arith.constant 0 : i32
    return %arg0, %c0_i32 : i32, i32
  }
  func.func @transform_2(%arg0: i32, %arg1: i32) -> (i32, i32) {
    %c0_i32 = arith.constant 0 : i32
    %c0_i32_0 = arith.constant 0 : i32
    %c0_i32_1 = arith.constant 0 : i32
    return %c0_i32, %c0_i32_0 : i32, i32
  }
  func.func @transform_3(%arg0: i32, %arg1: i32) -> (i32, i32) {
    %c0_i32 = arith.constant 0 : i32
    %c0_i32_0 = arith.constant 0 : i32
    %c0_i32_1 = arith.constant 0 : i32
    return %c0_i32, %c0_i32_0 : i32, i32
  }
  func.func @transform_4(%arg0: i32, %arg1: i32) -> (i32, i32) {
    %c0_i32 = arith.constant 0 : i32
    %c0_i32_0 = arith.constant 0 : i32
    %c0_i32_1 = arith.constant 0 : i32
    return %c0_i32, %c0_i32_0 : i32, i32
  }
  func.func @transform_5(%arg0: i32, %arg1: i32) -> (i32, i32) {
    %c0_i32 = arith.constant 0 : i32
    %c0_i32_0 = arith.constant 0 : i32
    return %c0_i32, %arg1 : i32, i32
  }
  func.func @transform_6(%arg0: i32, %arg1: i32) -> (i32, i32) {
    %c0_i32 = arith.constant 0 : i32
    %c0_i32_0 = arith.constant 0 : i32
    return %c0_i32, %arg1 : i32, i32
  }
  func.func @transform_7(%arg0: i32, %arg1: i32) -> (i32, i32) {
    %c0_i32 = arith.constant 0 : i32
    return %arg0, %arg1 : i32, i32
  }
}

</mosaic_0001>

<llo_original>
// kernel: tpu_custom_call.1
$region0: #{tpu_custom_call.1}
  #allocation0 [shape = 'u32[]', space=smem, size = 0x4, offset = 0x4, fixed_abs, tag = 'smem constant byte address 0x4 - core index']
  #allocation1 [shape = 'u32[72,128]{1,0:T(1,128)}', space=vmem, size = 0x9000, scoped, tag = 'internal scratch']
  #allocation2 [shape = 'bf16[16,128]{1,0:T(8,128)(2,1)}', space=vmem, size = 0x1000, scoped, tag = 'scratch operand']
  %s0 = inlined_call_operand.hbm [shape: f32[16,32], index: 0, kind: input, shape index: {}]
  %s1 = inlined_call_operand.hbm [shape: f32[16,32], index: 1, kind: input, shape index: {}]
  %s2 = inlined_call_operand.hbm [shape: bf16[32,128], index: 2, kind: input, shape index: {}]
  %s3 = inlined_call_operand.hbm [shape: bf16[32,128], index: 3, kind: input, shape index: {}]
  %s4 = inlined_call_operand.vmem [shape: f32[1,128], index: 4, kind: input, shape index: {}]
  %s5 = inlined_call_operand.hbm [shape: bf16[128,128], index: 5, kind: input, shape index: {}]
  %s6 = inlined_call_operand.vmem [shape: f32[1,128], index: 6, kind: input, shape index: {}]
  %s7 = inlined_call_operand.hbm [shape: f32[16,128], index: 7, kind: output, shape index: {}]
  %s8 = sld [smem:[#allocation0]]
  $region62: #{tpu_custom_call.1} parent=0
    _
  %s10 = ssub.s32 1, %s8
  %s11 = scalar_select 0, %s10, %s8
  $region1: #{tpu_custom_call.1} parent=0
    #allocation3 [shape = 'u8[8192]{0}', space=vmem, size = 0x2000, scoped, tag = 'input window, operand 0, single buffered']
    #allocation4 [shape = 's32[1]{0}', space=sflag, size = 0x4, scoped, tag = 'scoped memory for tpu_custom_call.1']
    #allocation5 [shape = 's32[1]{0}', space=sflag, size = 0x4, scoped, tag = 'scoped memory for tpu_custom_call.1']
    #allocation6 [shape = 'u8[8192]{0}', space=vmem, size = 0x2000, scoped, tag = 'input window, operand 1, single buffered']
    #allocation7 [shape = 's32[1]{0}', space=sflag, size = 0x4, scoped, tag = 'scoped memory for tpu_custom_call.1']
    #allocation8 [shape = 'u8[8192]{0}', space=vmem, size = 0x2000, scoped, tag = 'input window, operand 2, single buffered']
    #allocation9 [shape = 'u8[8192]{0}', space=vmem, size = 0x2000, scoped, tag = 'input window, operand 3, single buffered']
    #allocation10 [shape = 's32[1]{0}', space=sflag, size = 0x4, scoped, tag = 'scoped memory for tpu_custom_call.1']
    #allocation11 [shape = 'u8[32768]{0}', space=vmem, size = 0x8000, scoped, tag = 'input window, operand 5, single buffered']
    #allocation12 [shape = 'u8[8192]{0}', space=vmem, size = 0x2000, scoped, tag = 'output window, operand 0, single buffered']
    %12 = vsyncpa [#allocation4], 0
    %13 = vsyncpa [#allocation7], 0
    %14 = vsyncpa [#allocation10], 0
    %15 = vsyncpa [#allocation5], 0
    // Predicated region
    $region2: #{tpu_custom_call.1} parent=1 // pred_check
      _
    $region3: #{tpu_custom_call.1} parent=1 // pred_check_branch
      %17 = sbr.rel (0) target = $region5
    $region4: #{tpu_custom_call.1} parent=1 // pred_region
      %19 = vsyncadd [#allocation4], 0
      %s20 = sshll.u32 %s0, 4
      %s21 = int_to_ptr.hbm [resolvable:$true] %s20
      %s22 = sshll.u32 [#allocation3], 4
      %s23 = int_to_ptr.vmem [resolvable:$true] %s22
      %28 = dma.hbm_to_vmem [thread:$0]  %s21, 256, %s23, [#allocation4], 128, 128, 8
    $region5: #{tpu_custom_call.1} parent=1 // pred_fallthru
      _
    // Predicated region
    $region6: #{tpu_custom_call.1} parent=1 // pred_check
      _
    $region7: #{tpu_custom_call.1} parent=1 // pred_check_branch
      %30 = sbr.rel (0) target = $region9
    $region8: #{tpu_custom_call.1} parent=1 // pred_region
      %32 = vsyncadd [#allocation7], 0
      %s33 = sshll.u32 %s1, 4
      %s34 = int_to_ptr.hbm [resolvable:$true] %s33
      %s35 = sshll.u32 [#allocation6], 4
      %s36 = int_to_ptr.vmem [resolvable:$true] %s35
      %41 = dma.hbm_to_vmem [thread:$0]  %s34, 256, %s36, [#allocation7], 128, 128, 8
    $region9: #{tpu_custom_call.1} parent=1 // pred_fallthru
      _
    // Predicated region
    $region10: #{tpu_custom_call.1} parent=1 // pred_check
      _
    $region11: #{tpu_custom_call.1} parent=1 // pred_check_branch
      %43 = sbr.rel (0) target = $region13
    $region12: #{tpu_custom_call.1} parent=1 // pred_region
      %45 = vsyncadd [#allocation7], 0
      %s46 = sshll.u32 %s2, 4
      %s47 = int_to_ptr.hbm [resolvable:$true] %s46
      %s48 = sshll.u32 [#allocation8], 4
      %s49 = int_to_ptr.vmem [resolvable:$true] %s48
      %54 = dma.hbm_to_vmem [thread:$0]  %s47, 256, %s49, [#allocation7], 64, 64, 4
    $region13: #{tpu_custom_call.1} parent=1 // pred_fallthru
      _
    // Predicated region
    $region14: #{tpu_custom_call.1} parent=1 // pred_check
      _
    $region15: #{tpu_custom_call.1} parent=1 // pred_check_branch
      %56 = sbr.rel (0) target = $region17
    $region16: #{tpu_custom_call.1} parent=1 // pred_region
      %58 = vsyncadd [#allocation10], 0
      %s59 = sshll.u32 %s3, 4
      %s60 = int_to_ptr.hbm [resolvable:$true] %s59
      %s61 = sshll.u32 [#allocation9], 4
      %s62 = int_to_ptr.vmem [resolvable:$true] %s61
      %67 = dma.hbm_to_vmem [thread:$0]  %s60, 256, %s62, [#allocation10], 64, 64, 4
    $region17: #{tpu_custom_call.1} parent=1 // pred_fallthru
      _
    // Predicated region
    $region18: #{tpu_custom_call.1} parent=1 // pred_check
      _
    $region19: #{tpu_custom_call.1} parent=1 // pred_check_branch
      %69 = sbr.rel (0) target = $region21
    $region20: #{tpu_custom_call.1} parent=1 // pred_region
      _
    $region21: #{tpu_custom_call.1} parent=1 // pred_fallthru
      _
    // Predicated region
    $region22: #{tpu_custom_call.1} parent=1 // pred_check
      _
    $region23: #{tpu_custom_call.1} parent=1 // pred_check_branch
      %71 = sbr.rel (0) target = $region25
    $region24: #{tpu_custom_call.1} parent=1 // pred_region
      %73 = vsyncadd [#allocation10], 0
      %s74 = sshll.u32 %s5, 4
      %s75 = int_to_ptr.hbm [resolvable:$true] %s74
      %s76 = sshll.u32 [#allocation11], 4
      %s77 = int_to_ptr.vmem [resolvable:$true] %s76
      %82 = dma.hbm_to_vmem [thread:$0]  %s75, 1024, %s77, [#allocation10], 64, 64, 4
    $region25: #{tpu_custom_call.1} parent=1 // pred_fallthru
      _
    // Predicated region
    $region26: #{tpu_custom_call.1} parent=1 // pred_check
      _
    $region27: #{tpu_custom_call.1} parent=1 // pred_check_branch
      %84 = sbr.rel (0) target = $region29
    $region28: #{tpu_custom_call.1} parent=1 // pred_region
      _
    $region29: #{tpu_custom_call.1} parent=1 // pred_fallthru
      _
    // Predicated region
    $region30: #{tpu_custom_call.1} parent=1 // pred_check
      _
    $region31: #{tpu_custom_call.1} parent=1 // pred_check_branch
      %86 = sbr.rel (0) target = $region33
    $region32: #{tpu_custom_call.1} parent=1 // pred_region
      %88 = dma.done [#allocation4], 256
    $region33: #{tpu_custom_call.1} parent=1 // pred_fallthru
      _
    // Predicated region
    $region34: #{tpu_custom_call.1} parent=1 // pred_check
      _
    $region35: #{tpu_custom_call.1} parent=1 // pred_check_branch
      %90 = sbr.rel (0) target = $region37
    $region36: #{tpu_custom_call.1} parent=1 // pred_region
      %92 = dma.done [#allocation7], 256
    $region37: #{tpu_custom_call.1} parent=1 // pred_fallthru
      _
    // Predicated region
    $region38: #{tpu_custom_call.1} parent=1 // pred_check
      _
    $region39: #{tpu_custom_call.1} parent=1 // pred_check_branch
      %94 = sbr.rel (0) target = $region41
    $region40: #{tpu_custom_call.1} parent=1 // pred_region
      %96 = dma.done [#allocation7], 256
    $region41: #{tpu_custom_call.1} parent=1 // pred_fallthru
      _
    // Predicated region
    $region42: #{tpu_custom_call.1} parent=1 // pred_check
      _
    $region43: #{tpu_custom_call.1} parent=1 // pred_check_branch
      %98 = sbr.rel (0) target = $region45
    $region44: #{tpu_custom_call.1} parent=1 // pred_region
      %100 = dma.done [#allocation10], 256
    $region45: #{tpu_custom_call.1} parent=1 // pred_fallthru
      _
    // Predicated region
    $region46: #{tpu_custom_call.1} parent=1 // pred_check
      _
    $region47: #{tpu_custom_call.1} parent=1 // pred_check_branch
      %102 = sbr.rel (0) target = $region49
    $region48: #{tpu_custom_call.1} parent=1 // pred_region
      %104 = dma.done [#allocation10], 1024
    $region49: #{tpu_custom_call.1} parent=1 // pred_fallthru
      _
    %p106 = scmp.eq.s32.totalorder 0, 0
    // Predicated region
    $region50: #{tpu_custom_call.1} parent=1 // pred_check
      %p107 = pneg %p106
    $region51: #{tpu_custom_call.1} parent=1 // pred_check_branch
      %109 = sbr.rel (%p107) target = $region53
    $region52: #{tpu_custom_call.1} parent=1 // pred_region
      %v110 = vld [vmem:[#allocation3] sm:$0xff]
      %v111 = vld [vmem:[#allocation3 + $0x8] sm:$0xff]
      %v112 = vpack.c.bf16 %v111, %v110
      %v113 = vld [vmem:[#allocation8] sm:$0xf]
      %v114 = vld [vmem:[#allocation8 + $0x4] sm:$0xf]
      %v115 = vld [vmem:[#allocation8 + $0x8] sm:$0xf]
      %v116 = vld [vmem:[#allocation8 + $0xc] sm:$0xf]
      %v117 = vld [vmem:[#allocation6] sm:$0xff]
      %v118 = vld [vmem:[#allocation6 + $0x8] sm:$0xff]
      %v119 = vpack.c.bf16 %v118, %v117
      %v120 = vld [vmem:[#allocation9] sm:$0xf]
      %v121 = vld [vmem:[#allocation9 + $0x4] sm:$0xf]
      %v122 = vld [vmem:[#allocation9 + $0x8] sm:$0xf]
      %v123 = vld [vmem:[#allocation9 + $0xc] sm:$0xf]
      %v128 = vunpack.c.l.b16 %v120
      %v129 = vunpack.c.l.b16 %v121
      %v130 = vunpack.c.l.b16 %v122
      %v131 = vunpack.c.l.b16 %v123
      %v132 = vpack.c.b16 %v129, %v128
      %v133 = vpack.c.b16 %v131, %v130
      %vm136 = vcmask 261120
      %v138 = vsel %vm136, %v119, 0
      %140 = vmatpush.bf16.msra.mxu0 0
      %141 = vmatpush.bf16.msra.mxu0 0
      %142 = vmatpush.bf16.msra.mxu0 0
      %143 = vmatpush.bf16.msra.mxu0 0
      %144 = vmatpush.bf16.msra.mxu0 0
      %145 = vmatpush.bf16.msra.mxu0 0
      %146 = vmatpush.bf16.msra.mxu0 %v133
      %147 = vmatpush.bf16.msra.mxu0 %v132
      %148 = vmatmul.bf16.gmra.mxu0 %v138
      %v149 = vpop.f32.mrf.mxu0
      %v150 = vadd.f32 0.0, %v149
      %v151 = vpop.f32.mrf.mxu0
      %v152 = vadd.f32 0.0, %v151
      %153 = vdwg.mxu0
      %v158 = vunpack.c.l.b16 %v113
      %v159 = vunpack.c.l.b16 %v114
      %v160 = vunpack.c.l.b16 %v115
      %v161 = vunpack.c.l.b16 %v116
      %v162 = vpack.c.b16 %v159, %v158
      %v163 = vpack.c.b16 %v161, %v160
      %v167 = vsel %vm136, %v112, 0
      %169 = vmatpush.bf16.msra.mxu0 0
      %170 = vmatpush.bf16.msra.mxu0 0
      %171 = vmatpush.bf16.msra.mxu0 0
      %172 = vmatpush.bf16.msra.mxu0 0
      %173 = vmatpush.bf16.msra.mxu0 0
      %174 = vmatpush.bf16.msra.mxu0 0
      %175 = vmatpush.bf16.msra.mxu0 %v163
      %176 = vmatpush.bf16.msra.mxu0 %v162
      %177 = vmatmul.bf16.gmra.mxu0 %v167
      %v178 = vpop.f32.mrf.mxu0
      %v179 = vadd.f32 %v150, %v178
      %v180 = vpop.f32.mrf.mxu0
      %v181 = vadd.f32 %v152, %v180
      %182 = vdwg.mxu0
      %v183 = vld [vmem:[%s4] sm:$0x1]
      %v185 = vperm.slane %v183, 0
      %v187 = vadd.f32 %v179, %v185
      %v188 = vadd.f32 %v181, %v185
      %v189 = vmax.f32 %v187, 0.0
      %v190 = vmax.f32 %v188, 0.0
      %v191 = vpack.c.bf16 %v189, %v189
      %v192 = vpack.c.bf16 %v190, %v190
      %193 = vst [vmem:[#allocation2] sm:$0xf] %v191
      %194 = vst [vmem:[#allocation2 + $0x4] sm:$0xf] %v192
    $region53: #{tpu_custom_call.1} parent=1 // pred_fallthru
      _
    %v195 = vld [vmem:[#allocation2] sm:$0xf]
    %v196 = vld [vmem:[#allocation2 + $0x4] sm:$0xf]
    %v197 = vld [vmem:[#allocation11] sm:$0xf]
    %v198 = vld [vmem:[#allocation11 + $0x4] sm:$0xf]
    %v199 = vld [vmem:[#allocation11 + $0x8] sm:$0xf]
    %v200 = vld [vmem:[#allocation11 + $0xc] sm:$0xf]
    %v201 = vld [vmem:[#allocation11 + $0x10] sm:$0xf]
    %v202 = vld [vmem:[#allocation11 + $0x14] sm:$0xf]
    %v203 = vld [vmem:[#allocation11 + $0x18] sm:$0xf]
    %v204 = vld [vmem:[#allocation11 + $0x1c] sm:$0xf]
    %v205 = vld [vmem:[#allocation11 + $0x20] sm:$0xf]
    %v206 = vld [vmem:[#allocation11 + $0x24] sm:$0xf]
    %v207 = vld [vmem:[#allocation11 + $0x28] sm:$0xf]
    %v208 = vld [vmem:[#allocation11 + $0x2c] sm:$0xf]
    %v209 = vld [vmem:[#allocation11 + $0x30] sm:$0xf]
    %v210 = vld [vmem:[#allocation11 + $0x34] sm:$0xf]
    %v211 = vld [vmem:[#allocation11 + $0x38] sm:$0xf]
    %v212 = vld [vmem:[#allocation11 + $0x3c] sm:$0xf]
    %v213 = vld [vmem:[%s6] sm:$0x1]
    %v215 = vperm.slane %v213, 0
    %v219 = vunpack.c.l.b16 %v195
    %v220 = vunpack.c.l.b16 %v196
    %v221 = vpack.c.b16 %v220, %v219
    %v239 = vunpack.c.l.b16 %v197
    %v240 = vunpack.c.l.b16 %v198
    %v241 = vunpack.c.l.b16 %v199
    %v242 = vunpack.c.l.b16 %v200
    %v243 = vunpack.c.l.b16 %v201
    %v244 = vunpack.c.l.b16 %v202
    %v245 = vunpack.c.l.b16 %v203
    %v246 = vunpack.c.l.b16 %v204
    %v247 = vunpack.c.l.b16 %v205
    %v248 = vunpack.c.l.b16 %v206
    %v249 = vunpack.c.l.b16 %v207
    %v250 = vunpack.c.l.b16 %v208
    %v251 = vunpack.c.l.b16 %v209
    %v252 = vunpack.c.l.b16 %v210
    %v253 = vunpack.c.l.b16 %v211
    %v254 = vunpack.c.l.b16 %v212
    %v255 = vpack.c.b16 %v240, %v239
    %v256 = vpack.c.b16 %v242, %v241
    %v257 = vpack.c.b16 %v244, %v243
    %v258 = vpack.c.b16 %v246, %v245
    %v259 = vpack.c.b16 %v248, %v247
    %v260 = vpack.c.b16 %v250, %v249
    %v261 = vpack.c.b16 %v252, %v251
    %v262 = vpack.c.b16 %v254, %v253
    %271 = vmatpush.bf16.msra.mxu0 %v262
    %272 = vmatpush.bf16.msra.mxu0 %v261
    %273 = vmatpush.bf16.msra.mxu0 %v260
    %274 = vmatpush.bf16.msra.mxu0 %v259
    %275 = vmatpush.bf16.msra.mxu0 %v258
    %276 = vmatpush.bf16.msra.mxu0 %v257
    %277 = vmatpush.bf16.msra.mxu0 %v256
    %278 = vmatpush.bf16.msra.mxu0 %v255
    %279 = vmatmul.bf16.gmra.mxu0 %v221
    %v280 = vpop.f32.mrf.mxu0
    %v281 = vadd.f32 %v215, %v280
    %v282 = vpop.f32.mrf.mxu0
    %v283 = vadd.f32 %v215, %v282
    %284 = vdwg.mxu0
    %285 = vst [vmem:[#allocation12] sm:$0xff] %v281
    %286 = vst [vmem:[#allocation12 + $0x8] sm:$0xff] %v283
    // Predicated region
    $region54: #{tpu_custom_call.1} parent=1 // pred_check
      _
    $region55: #{tpu_custom_call.1} parent=1 // pred_check_branch
      %288 = sbr.rel (0) target = $region57
    $region56: #{tpu_custom_call.1} parent=1 // pred_region
      %290 = vsyncadd [#allocation5], 0
      %s291 = sshll.u32 [#allocation12], 4
      %s292 = int_to_ptr.vmem [resolvable:$true] %s291
      %s293 = sshll.u32 %s7, 4
      %s294 = int_to_ptr.hbm [resolvable:$true] %s293
      %299 = dma.vmem_to_hbm [thread:$0]  %s292, 256, %s294, [#allocation5], 128, 128, 8
    $region57: #{tpu_custom_call.1} parent=1 // pred_fallthru
      _
    // Predicated region
    $region58: #{tpu_custom_call.1} parent=1 // pred_check
      _
    $region59: #{tpu_custom_call.1} parent=1 // pred_check_branch
      %301 = sbr.rel (0) target = $region61
    $region60: #{tpu_custom_call.1} parent=1 // pred_region
      %303 = dma.done [#allocation5], 256
    $region61: #{tpu_custom_call.1} parent=1 // pred_fallthru
      _
    %304 = vsyncpa [#allocation4], 1
    %305 = vsyncpa [#allocation7], 1
    %306 = vsyncpa [#allocation10], 1
    %307 = vsyncpa [#allocation5], 1

// kernel: tpu_custom_call.1
$region0: #{tpu_custom_call.1}
  #allocation0 [shape = 'u32[]', space=smem, size = 0x4, offset = 0x4, fixed_abs, tag = 'smem constant byte address 0x4 - core index']
  #allocation1 [shape = 'u32[72,128]{1,0:T(1,128)}', space=vmem, size = 0x9000, scoped, tag = 'internal scratch']
  #allocation2 [shape = 'bf16[16,128]{1,0:T(8,128)(2,1)}', space=vmem, size = 0x1000, scoped, tag = 'scratch operand']
  %s0 = inlined_call_operand.hbm [shape: f32[16,32], index: 0, kind: input, shape index: {}]
  %s1 = inlined_call_operand.hbm [shape: f32[16,32], index: 1, kind: input, shape index: {}]
  %s2 = inlined_call_operand.hbm [shape: bf16[32,128], index: 2, kind: input, shape index: {}]
  %s3 = inlined_call_operand.hbm [shape: bf16[32,128], index: 3, kind: input, shape index: {}]
  %s4 = inlined_call_operand.vmem [shape: f32[1,128], index: 4, kind: input, shape index: {}]
  %s5 = inlined_call_operand.hbm [shape: bf16[128,128], index: 5, kind: input, shape index: {}]
  %s6 = inlined_call_operand.vmem [shape: f32[1,128], index: 6, kind: input, shape index: {}]
  %s7 = inlined_call_operand.hbm [shape: f32[16,128], index: 7, kind: output, shape index: {}]
  %s8 = sld [smem:[#allocation0]]
  $region62: #{tpu_custom_call.1} parent=0
    _
  %s10 = ssub.s32 1, %s8
  %s11 = scalar_select 0, %s10, %s8
  $region1: #{tpu_custom_call.1} parent=0
    #allocation3 [shape = 'u8[8192]{0}', space=vmem, size = 0x2000, scoped, tag = 'input window, operand 0, single buffered']
    #allocation4 [shape = 's32[1]{0}', space=sflag, size = 0x4, scoped, tag = 'scoped memory for tpu_custom_call.1']
    #allocation5 [shape = 's32[1]{0}', space=sflag, size = 0x4, scoped, tag = 'scoped memory for tpu_custom_call.1']
    #allocation6 [shape = 'u8[8192]{0}', space=vmem, size = 0x2000, scoped, tag = 'input window, operand 1, single buffered']
    #allocation7 [shape = 's32[1]{0}', space=sflag, size = 0x4, scoped, tag = 'scoped memory for tpu_custom_call.1']
    #allocation8 [shape = 'u8[8192]{0}', space=vmem, size = 0x2000, scoped, tag = 'input window, operand 2, single buffered']
    #allocation9 [shape = 'u8[8192]{0}', space=vmem, size = 0x2000, scoped, tag = 'input window, operand 3, single buffered']
    #allocation10 [shape = 's32[1]{0}', space=sflag, size = 0x4, scoped, tag = 'scoped memory for tpu_custom_call.1']
    #allocation11 [shape = 'u8[32768]{0}', space=vmem, size = 0x8000, scoped, tag = 'input window, operand 5, single buffered']
    #allocation12 [shape = 'u8[8192]{0}', space=vmem, size = 0x2000, scoped, tag = 'output window, operand 0, single buffered']
    %12 = vsyncpa [#allocation4], 0
    %13 = vsyncpa [#allocation7], 0
    %14 = vsyncpa [#allocation10], 0
    %15 = vsyncpa [#allocation5], 0
    // Predicated region
    $region2: #{tpu_custom_call.1} parent=1 // pred_check
      _
    $region3: #{tpu_custom_call.1} parent=1 // pred_check_branch
      %17 = sbr.rel (0) target = $region5
    $region4: #{tpu_custom_call.1} parent=1 // pred_region
      %19 = vsyncadd [#allocation4], 0
      %s20 = sshll.u32 %s0, 4
      %s21 = int_to_ptr.hbm [resolvable:$true] %s20
      %s22 = sshll.u32 [#allocation3], 4
      %s23 = int_to_ptr.vmem [resolvable:$true] %s22
      %28 = dma.hbm_to_vmem [thread:$0]  %s21, 256, %s23, [#allocation4], 128, 128, 8
    $region5: #{tpu_custom_call.1} parent=1 // pred_fallthru
      _
    // Predicated region
    $region6: #{tpu_custom_call.1} parent=1 // pred_check
      _
    $region7: #{tpu_custom_call.1} parent=1 // pred_check_branch
      %30 = sbr.rel (0) target = $region9
    $region8: #{tpu_custom_call.1} parent=1 // pred_region
      %32 = vsyncadd [#allocation7], 0
      %s33 = sshll.u32 %s1, 4
      %s34 = int_to_ptr.hbm [resolvable:$true] %s33
      %s35 = sshll.u32 [#allocation6], 4
      %s36 = int_to_ptr.vmem [resolvable:$true] %s35
      %41 = dma.hbm_to_vmem [thread:$0]  %s34, 256, %s36, [#allocation7], 128, 128, 8
    $region9: #{tpu_custom_call.1} parent=1 // pred_fallthru
      _
    // Predicated region
    $region10: #{tpu_custom_call.1} parent=1 // pred_check
      _
    $region11: #{tpu_custom_call.1} parent=1 // pred_check_branch
      %43 = sbr.rel (0) target = $region13
    $region12: #{tpu_custom_call.1} parent=1 // pred_region
      %45 = vsyncadd [#allocation7], 0
      %s46 = sshll.u32 %s2, 4
      %s47 = int_to_ptr.hbm [resolvable:$true] %s46
      %s48 = sshll.u32 [#allocation8], 4
      %s49 = int_to_ptr.vmem [resolvable:$true] %s48
      %54 = dma.hbm_to_vmem [thread:$0]  %s47, 256, %s49, [#allocation7], 64, 64, 4
    $region13: #{tpu_custom_call.1} parent=1 // pred_fallthru
      _
    // Predicated region
    $region14: #{tpu_custom_call.1} parent=1 // pred_check
      _
    $region15: #{tpu_custom_call.1} parent=1 // pred_check_branch
      %56 = sbr.rel (0) target = $region17
    $region16: #{tpu_custom_call.1} parent=1 // pred_region
      %58 = vsyncadd [#allocation10], 0
      %s59 = sshll.u32 %s3, 4
      %s60 = int_to_ptr.hbm [resolvable:$true] %s59
      %s61 = sshll.u32 [#allocation9], 4
      %s62 = int_to_ptr.vmem [resolvable:$true] %s61
      %67 = dma.hbm_to_vmem [thread:$0]  %s60, 256, %s62, [#allocation10], 64, 64, 4
    $region17: #{tpu_custom_call.1} parent=1 // pred_fallthru
      _
    // Predicated region
    $region18: #{tpu_custom_call.1} parent=1 // pred_check
      _
    $region19: #{tpu_custom_call.1} parent=1 // pred_check_branch
      %69 = sbr.rel (0) target = $region21
    $region20: #{tpu_custom_call.1} parent=1 // pred_region
      _
    $region21: #{tpu_custom_call.1} parent=1 // pred_fallthru
      _
    // Predicated region
    $region22: #{tpu_custom_call.1} parent=1 // pred_check
      _
    $region23: #{tpu_custom_call.1} parent=1 // pred_check_branch
      %71 = sbr.rel (0) target = $region25
    $region24: #{tpu_custom_call.1} parent=1 // pred_region
      %73 = vsyncadd [#allocation10], 0
      %s74 = sshll.u32 %s5, 4
      %s75 = int_to_ptr.hbm [resolvable:$true] %s74
      %s76 = sshll.u32 [#allocation11], 4
      %s77 = int_to_ptr.vmem [resolvable:$true] %s76
      %82 = dma.hbm_to_vmem [thread:$0]  %s75, 1024, %s77, [#allocation10], 64, 64, 4
    $region25: #{tpu_custom_call.1} parent=1 // pred_fallthru
      _
    // Predicated region
    $region26: #{tpu_custom_call.1} parent=1 // pred_check
      _
    $region27: #{tpu_custom_call.1} parent=1 // pred_check_branch
      %84 = sbr.rel (0) target = $region29
    $region28: #{tpu_custom_call.1} parent=1 // pred_region
      _
    $region29: #{tpu_custom_call.1} parent=1 // pred_fallthru
      _
    // Predicated region
    $region30: #{tpu_custom_call.1} parent=1 // pred_check
      _
    $region31: #{tpu_custom_call.1} parent=1 // pred_check_branch
      %86 = sbr.rel (0) target = $region33
    $region32: #{tpu_custom_call.1} parent=1 // pred_region
      %88 = dma.done [#allocation4], 256
    $region33: #{tpu_custom_call.1} parent=1 // pred_fallthru
      _
    // Predicated region
    $region34: #{tpu_custom_call.1} parent=1 // pred_check
      _
    $region35: #{tpu_custom_call.1} parent=1 // pred_check_branch
      %90 = sbr.rel (0) target = $region37
    $region36: #{tpu_custom_call.1} parent=1 // pred_region
      %92 = dma.done [#allocation7], 256
    $region37: #{tpu_custom_call.1} parent=1 // pred_fallthru
      _
    // Predicated region
    $region38: #{tpu_custom_call.1} parent=1 // pred_check
      _
    $region39: #{tpu_custom_call.1} parent=1 // pred_check_branch
      %94 = sbr.rel (0) target = $region41
    $region40: #{tpu_custom_call.1} parent=1 // pred_region
      %96 = dma.done [#allocation7], 256
    $region41: #{tpu_custom_call.1} parent=1 // pred_fallthru
      _
    // Predicated region
    $region42: #{tpu_custom_call.1} parent=1 // pred_check
      _
    $region43: #{tpu_custom_call.1} parent=1 // pred_check_branch
      %98 = sbr.rel (0) target = $region45
    $region44: #{tpu_custom_call.1} parent=1 // pred_region
      %100 = dma.done [#allocation10], 256
    $region45: #{tpu_custom_call.1} parent=1 // pred_fallthru
      _
    // Predicated region
    $region46: #{tpu_custom_call.1} parent=1 // pred_check
      _
    $region47: #{tpu_custom_call.1} parent=1 // pred_check_branch
      %102 = sbr.rel (0) target = $region49
    $region48: #{tpu_custom_call.1} parent=1 // pred_region
      %104 = dma.done [#allocation10], 1024
    $region49: #{tpu_custom_call.1} parent=1 // pred_fallthru
      _
    %p106 = scmp.eq.s32.totalorder 0, 0
    // Predicated region
    $region50: #{tpu_custom_call.1} parent=1 // pred_check
      %p107 = pneg %p106
    $region51: #{tpu_custom_call.1} parent=1 // pred_check_branch
      %109 = sbr.rel (%p107) target = $region53
    $region52: #{tpu_custom_call.1} parent=1 // pred_region
      %v110 = vld [vmem:[#allocation3] sm:$0xff]
      %v111 = vld [vmem:[#allocation3 + $0x8] sm:$0xff]
      %v112 = vpack.c.bf16 %v111, %v110
      %v113 = vld [vmem:[#allocation8] sm:$0xf]
      %v114 = vld [vmem:[#allocation8 + $0x4] sm:$0xf]
      %v115 = vld [vmem:[#allocation8 + $0x8] sm:$0xf]
      %v116 = vld [vmem:[#allocation8 + $0xc] sm:$0xf]
      %v117 = vld [vmem:[#allocation6] sm:$0xff]
      %v118 = vld [vmem:[#allocation6 + $0x8] sm:$0xff]
      %v119 = vpack.c.bf16 %v118, %v117
      %v120 = vld [vmem:[#allocation9] sm:$0xf]
      %v121 = vld [vmem:[#allocation9 + $0x4] sm:$0xf]
      %v122 = vld [vmem:[#allocation9 + $0x8] sm:$0xf]
      %v123 = vld [vmem:[#allocation9 + $0xc] sm:$0xf]
      %v128 = vunpack.c.l.b16 %v120
      %v129 = vunpack.c.l.b16 %v121
      %v130 = vunpack.c.l.b16 %v122
      %v131 = vunpack.c.l.b16 %v123
      %v132 = vpack.c.b16 %v129, %v128
      %v133 = vpack.c.b16 %v131, %v130
      %vm136 = vcmask 261120
      %v138 = vsel %vm136, %v119, 0
      %140 = vmatpush.bf16.msra.mxu0 0
      %141 = vmatpush.bf16.msra.mxu0 0
      %142 = vmatpush.bf16.msra.mxu0 0
      %143 = vmatpush.bf16.msra.mxu0 0
      %144 = vmatpush.bf16.msra.mxu0 0
      %145 = vmatpush.bf16.msra.mxu0 0
      %146 = vmatpush.bf16.msra.mxu0 %v133
      %147 = vmatpush.bf16.msra.mxu0 %v132
      %148 = vmatmul.bf16.gmra.mxu0 %v138
      %v149 = vpop.f32.mrf.mxu0
      %v150 = vadd.f32 0.0, %v149
      %v151 = vpop.f32.mrf.mxu0
      %v152 = vadd.f32 0.0, %v151
      %153 = vdwg.mxu0
      %v158 = vunpack.c.l.b16 %v113
      %v159 = vunpack.c.l.b16 %v114
      %v160 = vunpack.c.l.b16 %v115
      %v161 = vunpack.c.l.b16 %v116
      %v162 = vpack.c.b16 %v159, %v158
      %v163 = vpack.c.b16 %v161, %v160
      %v167 = vsel %vm136, %v112, 0
      %169 = vmatpush.bf16.msra.mxu0 0
      %170 = vmatpush.bf16.msra.mxu0 0
      %171 = vmatpush.bf16.msra.mxu0 0
      %172 = vmatpush.bf16.msra.mxu0 0
      %173 = vmatpush.bf16.msra.mxu0 0
      %174 = vmatpush.bf16.msra.mxu0 0
      %175 = vmatpush.bf16.msra.mxu0 %v163
      %176 = vmatpush.bf16.msra.mxu0 %v162
      %177 = vmatmul.bf16.gmra.mxu0 %v167
      %v178 = vpop.f32.mrf.mxu0
      %v179 = vadd.f32 %v150, %v178
      %v180 = vpop.f32.mrf.mxu0
      %v181 = vadd.f32 %v152, %v180
      %182 = vdwg.mxu0
      %v183 = vld [vmem:[%s4] sm:$0x1]
      %v185 = vperm.slane %v183, 0
      %v187 = vadd.f32 %v179, %v185
      %v188 = vadd.f32 %v181, %v185
      %v189 = vmax.f32 %v187, 0.0
      %v190 = vmax.f32 %v188, 0.0
      %v191 = vpack.c.bf16 %v189, %v189
      %v192 = vpack.c.bf16 %v190, %v190
      %193 = vst [vmem:[#allocation2] sm:$0xf] %v191
      %194 = vst [vmem:[#allocation2 + $0x4] sm:$0xf] %v192
    $region53: #{tpu_custom_call.1} parent=1 // pred_fallthru
      _
    %v195 = vld [vmem:[#allocation2] sm:$0xf]
    %v196 = vld [vmem:[#allocation2 + $0x4] sm:$0xf]
    %v197 = vld [vmem:[#allocation11] sm:$0xf]
    %v198 = vld [vmem:[#allocation11 + $0x4] sm:$0xf]
    %v199 = vld [vmem:[#allocation11 + $0x8] sm:$0xf]
    %v200 = vld [vmem:[#allocation11 + $0xc] sm:$0xf]
    %v201 = vld [vmem:[#allocation11 + $0x10] sm:$0xf]
    %v202 = vld [vmem:[#allocation11 + $0x14] sm:$0xf]
    %v203 = vld [vmem:[#allocation11 + $0x18] sm:$0xf]
    %v204 = vld [vmem:[#allocation11 + $0x1c] sm:$0xf]
    %v205 = vld [vmem:[#allocation11 + $0x20] sm:$0xf]
    %v206 = vld [vmem:[#allocation11 + $0x24] sm:$0xf]
    %v207 = vld [vmem:[#allocation11 + $0x28] sm:$0xf]
    %v208 = vld [vmem:[#allocation11 + $0x2c] sm:$0xf]
    %v209 = vld [vmem:[#allocation11 + $0x30] sm:$0xf]
    %v210 = vld [vmem:[#allocation11 + $0x34] sm:$0xf]
    %v211 = vld [vmem:[#allocation11 + $0x38] sm:$0xf]
    %v212 = vld [vmem:[#allocation11 + $0x3c] sm:$0xf]
    %v213 = vld [vmem:[%s6] sm:$0x1]
    %v215 = vperm.slane %v213, 0
    %v219 = vunpack.c.l.b16 %v195
    %v220 = vunpack.c.l.b16 %v196
    %v221 = vpack.c.b16 %v220, %v219
    %v239 = vunpack.c.l.b16 %v197
    %v240 = vunpack.c.l.b16 %v198
    %v241 = vunpack.c.l.b16 %v199
    %v242 = vunpack.c.l.b16 %v200
    %v243 = vunpack.c.l.b16 %v201
    %v244 = vunpack.c.l.b16 %v202
    %v245 = vunpack.c.l.b16 %v203
    %v246 = vunpack.c.l.b16 %v204
    %v247 = vunpack.c.l.b16 %v205
    %v248 = vunpack.c.l.b16 %v206
    %v249 = vunpack.c.l.b16 %v207
    %v250 = vunpack.c.l.b16 %v208
    %v251 = vunpack.c.l.b16 %v209
    %v252 = vunpack.c.l.b16 %v210
    %v253 = vunpack.c.l.b16 %v211
    %v254 = vunpack.c.l.b16 %v212
    %v255 = vpack.c.b16 %v240, %v239
    %v256 = vpack.c.b16 %v242, %v241
    %v257 = vpack.c.b16 %v244, %v243
    %v258 = vpack.c.b16 %v246, %v245
    %v259 = vpack.c.b16 %v248, %v247
    %v260 = vpack.c.b16 %v250, %v249
    %v261 = vpack.c.b16 %v252, %v251
    %v262 = vpack.c.b16 %v254, %v253
    %271 = vmatpush.bf16.msra.mxu0 %v262
    %272 = vmatpush.bf16.msra.mxu0 %v261
    %273 = vmatpush.bf16.msra.mxu0 %v260
    %274 = vmatpush.bf16.msra.mxu0 %v259
    %275 = vmatpush.bf16.msra.mxu0 %v258
    %276 = vmatpush.bf16.msra.mxu0 %v257
    %277 = vmatpush.bf16.msra.mxu0 %v256
    %278 = vmatpush.bf16.msra.mxu0 %v255
    %279 = vmatmul.bf16.gmra.mxu0 %v221
    %v280 = vpop.f32.mrf.mxu0
    %v281 = vadd.f32 %v215, %v280
    %v282 = vpop.f32.mrf.mxu0
    %v283 = vadd.f32 %v215, %v282
    %284 = vdwg.mxu0
    %285 = vst [vmem:[#allocation12] sm:$0xff] %v281
    %286 = vst [vmem:[#allocation12 + $0x8] sm:$0xff] %v283
    // Predicated region
    $region54: #{tpu_custom_call.1} parent=1 // pred_check
      _
    $region55: #{tpu_custom_call.1} parent=1 // pred_check_branch
      %288 = sbr.rel (0) target = $region57
    $region56: #{tpu_custom_call.1} parent=1 // pred_region
      %290 = vsyncadd [#allocation5], 0
      %s291 = sshll.u32 [#allocation12], 4
      %s292 = int_to_ptr.vmem [resolvable:$true] %s291
      %s293 = sshll.u32 %s7, 4
      %s294 = int_to_ptr.hbm [resolvable:$true] %s293
      %299 = dma.vmem_to_hbm [thread:$0]  %s292, 256, %s294, [#allocation5], 128, 128, 8
    $region57: #{tpu_custom_call.1} parent=1 // pred_fallthru
      _
    // Predicated region
    $region58: #{tpu_custom_call.1} parent=1 // pred_check
      _
    $region59: #{tpu_custom_call.1} parent=1 // pred_check_branch
      %301 = sbr.rel (0) target = $region61
    $region60: #{tpu_custom_call.1} parent=1 // pred_region
      %303 = dma.done [#allocation5], 256
    $region61: #{tpu_custom_call.1} parent=1 // pred_fallthru
      _
    %304 = vsyncpa [#allocation4], 1
    %305 = vsyncpa [#allocation7], 1
    %306 = vsyncpa [#allocation10], 1
    %307 = vsyncpa [#allocation5], 1

</llo_original>
